<compile_context>
chip_gen: v7x
topology: tpu7x:2x2x1
jax: 0.10.0
libtpu: 0.0.40
codegen_flags: <defaults>
</compile_context>

<pallas_src>
import jax
import jax.numpy as jnp
from jax.experimental import pallas as pl
from jax.experimental.pallas import tpu as pltpu


def _identity_kernel(x_ref, o_ref):
    # Pure passthrough: copy the current VMEM tile to the (aliased) output tile.
    o_ref[...] = x_ref[...]


def _copy_2d(x2d):
    rows, cols = x2d.shape
    itemsize = jnp.dtype(x2d.dtype).itemsize

    # Target ~2 MiB per block buffer; keep tile_rows a multiple of 8
    # (or equal to the full row extent, which is always legal).
    target_rows = max(8, (2 * 1024 * 1024) // max(1, cols * itemsize))
    target_rows = max(8, (target_rows // 8) * 8)
    tile_rows = min(target_rows, rows)
    grid = (pl.cdiv(rows, tile_rows),)  # edge block is masked, never whole-array

    return pl.pallas_call(
        _identity_kernel,
        out_shape=jax.ShapeDtypeStruct((rows, cols), x2d.dtype),
        grid_spec=pltpu.PrefetchScalarGridSpec(
            num_scalar_prefetch=0,
            grid=grid,
            in_specs=[pl.BlockSpec((tile_rows, cols), lambda i: (i, 0))],
            out_specs=pl.BlockSpec((tile_rows, cols), lambda i: (i, 0)),
        ),
        # Let XLA alias the output HBM buffer to the input — no extra allocation.
        input_output_aliases={0: 0},
        compiler_params=pltpu.CompilerParams(
            dimension_semantics=("parallel",),
        ),
    )(x2d)


@jax.jit
def identity(x):
    """Pallas TPU implementation of trustmark.denoise.Identity.forward."""
    orig_shape = x.shape
    n = x.size
    if n == 0:
        return x

    # Lane-dense flattening: make the last dim a large multiple of 128 when
    # the total element count allows it (Identity has no axis semantics).
    cols = None
    for c in (1024, 512, 256, 128):
        if n % c == 0:
            cols = c
            break
    if cols is None:
        # Fallback for sizes not divisible by 128: keep the original last dim
        # (block last dim == full array dim is always a legal block shape).
        cols = orig_shape[-1] if (x.ndim >= 1 and orig_shape[-1] > 0) else 1

    x2d = x.reshape(-1, cols)
    out2d = _copy_2d(x2d)
    return out2d.reshape(orig_shape)


if __name__ == "__main__":
    key = jax.random.PRNGKey(0)
    # Small NCHW input consistent with a denoiser-style module.
    x = jax.random.normal(key, (2, 4, 16, 16), dtype=jnp.float32)
    expected = jax.device_get(x)  # host copy (robust to output/input aliasing)

    y = identity(x)
    jax.block_until_ready(y)

    assert y.shape == x.shape, (y.shape, x.shape)
    assert y.dtype == x.dtype, (y.dtype, x.dtype)
    assert (jax.device_get(y) == expected).all(), "Identity output mismatch"

    print("KERNEL_OK")
</pallas_src>

<mosaic_0001>
module attributes {stable_mosaic.version = 11 : i64} {
  func.func @_identity_kernel(%arg0: i32, %arg1: memref<2x1024xf32, #tpu.memory_space<vmem>>, %arg2: memref<2x1024xf32, #tpu.memory_space<vmem>>) attributes {dimension_semantics = [#tpu.dimension_semantics<parallel>], iteration_bounds = array<i64: 1>, scalar_prefetch = 0 : i64, scratch_operands = 0 : i64, tpu.core_type = #tpu.core_type<tc>, window_params = [{transform_indices = @transform_0, window_bounds = array<i64: 2, 1024>}, {transform_indices = @transform_1, window_bounds = array<i64: 2, 1024>}]} {
    %c0 = arith.constant 0 : index
    %c0_0 = arith.constant 0 : index
    %0 = vector.load %arg1[%c0, %c0_0] : memref<2x1024xf32, #tpu.memory_space<vmem>>, vector<2x1024xf32>
    %c0_1 = arith.constant 0 : index
    %c0_2 = arith.constant 0 : index
    %1 = vector.load %arg2[%c0_1, %c0_2] : memref<2x1024xf32, #tpu.memory_space<vmem>>, vector<2x1024xf32>
    tpu.vector_store %arg2[%c0_1, %c0_2], %0 {strides = array<i32>} : memref<2x1024xf32, #tpu.memory_space<vmem>>, vector<2x1024xf32>,
    return
  }
  func.func @transform_0(%arg0: i32) -> (i32, i32) {
    %c0_i32 = arith.constant 0 : i32
    %c0_i32_0 = arith.constant 0 : i32
    return %arg0, %c0_i32 : i32, i32
  }
  func.func @transform_1(%arg0: i32) -> (i32, i32) {
    %c0_i32 = arith.constant 0 : i32
    %c0_i32_0 = arith.constant 0 : i32
    return %arg0, %c0_i32 : i32, i32
  }
}

</mosaic_0001>

<llo_original>
// kernel: identity.1
$region0: #{identity.1}
  #allocation0 [shape = 'u32[]', space=smem, size = 0x4, offset = 0x4, fixed_abs, tag = 'smem constant byte address 0x4 - core index']
  #allocation1 [shape = 'u32[144,128]{1,0:T(1,128)}', space=vmem, size = 0x12000, scoped, tag = 'internal scratch']
  %s0 = inlined_call_operand.vmem [shape: f32[2,1024], index: 0, kind: input, shape index: {}, may-alias: {0,1}]
  %s1 = inlined_call_operand.vmem [shape: f32[2,1024], index: 1, kind: output, shape index: {}, may-alias: {0,1}]
  %s2 = sld [smem:[#allocation0]]
  $region14: #{identity.1} parent=0
    _
  %s4 = ssub.s32 1, %s2
  %s5 = scalar_select 0, %s4, %s2
  // Predicated region
  $region2: #{identity.1} parent=0 // pred_check
    _
  $region3: #{identity.1} parent=0 // pred_check_branch
    %7 = sbr.rel (0) target = $region5
  $region4: #{identity.1} parent=0 // pred_region
    _
  $region5: #{identity.1} parent=0 // pred_fallthru
    _
  %v8 = vld [vmem:[%s0] sm:$0xff]
  %v9 = vld [vmem:[%s0 + $0x8] sm:$0xff]
  %10 = vst [vmem:[%s1] sm:$0xff] %v8
  %11 = vst [vmem:[%s1 + $0x8] sm:$0xff] %v9
  // Predicated region
  $region6: #{identity.1} parent=0 // pred_check
    _
  $region7: #{identity.1} parent=0 // pred_check_branch
    %13 = sbr.rel (0) target = $region9
  $region8: #{identity.1} parent=0 // pred_region
    _
  $region9: #{identity.1} parent=0 // pred_fallthru
    _
  // Predicated region
  $region10: #{identity.1} parent=0 // pred_check
    _
  $region11: #{identity.1} parent=0 // pred_check_branch
    %15 = sbr.rel (0) target = $region13
  $region12: #{identity.1} parent=0 // pred_region
    _
  $region13: #{identity.1} parent=0 // pred_fallthru
    _

</llo_original>
